<compile_context>
chip_gen: v7x
topology: tpu7x:2x2x1
jax: 0.10.0
libtpu: 0.0.40
codegen_flags: <defaults>
</compile_context>

<pallas_src>
import functools

import jax
import jax.numpy as jnp
from jax.experimental import pallas as pl
from jax.experimental.pallas import tpu as pltpu


def _tcn_kernel(x_ref, w0_ref, w1_ref, b_ref, o_ref, xprev_ref, carry_ref):
    # x_ref      : (1, Rt, L)  packed rows for one (batch, time-tile) block
    # w0_ref     : (L, L)      block-diag previous-step tap, (cin, cout) layout
    # w1_ref     : (L, L)      block-diag current-step tap
    # b_ref      : (1, L)      packed bias
    # o_ref      : (1, Rt, L)
    # xprev_ref  : (Rt, L)     VMEM scratch: one-time-step-shifted rows
    # carry_ref  : (shift, L)  VMEM carry: last time step of the previous tile
    t = pl.program_id(1)
    x = x_ref[0]                                  # (Rt, L)
    rt, _ = x.shape
    shift = carry_ref.shape[0]                    # one time step, packed rows

    # t == 0: causal left padding -> previous time step is all zeros.
    @pl.when(t == 0)
    def _():
        carry_ref[...] = jnp.zeros_like(carry_ref)

    # xprev[r] = x[r - shift] within the tile; the first `shift` rows come
    # from the carry (last time step of the previous tile of this batch).
    xprev_ref[0:shift, :] = carry_ref[...]
    if rt > shift:                                # static Python branch
        xprev_ref[shift:rt, :] = x[0:rt - shift, :]
    # Save this tile's last time step for the next tile of the same batch.
    carry_ref[...] = x[rt - shift:rt, :]

    acc = jnp.dot(x, w1_ref[...], preferred_element_type=jnp.float32)
    acc = acc + jnp.dot(xprev_ref[...], w0_ref[...],
                        preferred_element_type=jnp.float32)
    acc = acc + b_ref[...]
    o_ref[0] = jnp.maximum(acc, 0.0).astype(o_ref.dtype)


def _choose_time_tile(T, shift, lanes, itemsize, target_bytes=1 << 20):
    """Smallest divisor-of-T time tile whose row block is a multiple of 8 rows
    (or the full slab) and is at least ~target_bytes, so blocks pipeline well
    and stay comfortably inside VMEM for long sequences / many nodes."""
    for tt in range(1, T + 1):
        if T % tt:
            continue
        rows = tt * shift
        if rows % 8 != 0 and tt != T:
            continue                # (8,128) block constraint
        if rows * lanes * itemsize >= target_bytes or tt == T:
            return tt
    return T


def temporal_conv_net(x, weight, bias):
    """Causal temporal conv (kernel_size=2, dilation=1) + ReLU.

    x:      (B, T, N, C)  float32
    weight: (C, C, 1, 2)  Conv2d weight (cout, cin, 1, k)
    bias:   (C,)
    returns (B, T, N, C)
    """
    B, T, N, C = x.shape
    dtype = x.dtype
    itemsize = jnp.dtype(dtype).itemsize

    # Lane packing: fold P consecutive node rows into one 128-lane row when
    # the shapes allow it; otherwise fall back to P=1 (correct, less dense).
    if C <= 128 and 128 % C == 0 and N % (128 // C) == 0:
        P = 128 // C
    else:
        P = 1
    L = P * C                     # lane width of the packed rows
    shift = N // P                # one time step, measured in packed rows
    Rb = T * shift                # packed rows per batch element

    # Pure relabeling of the contiguous buffer -- no data movement.
    xp = x.reshape(B, Rb, L)

    # Taps transposed to (cin, cout), then replicated block-diagonally so a
    # packed row [r0|r1|..|r_{P-1}] @ Wp = [r0@W | r1@W | .. | r_{P-1}@W].
    w0 = jnp.transpose(weight[:, :, 0, 0])          # previous-step tap
    w1 = jnp.transpose(weight[:, :, 0, 1])          # current-step tap
    eye = jnp.eye(P, dtype=weight.dtype)
    w0p = jnp.kron(eye, w0)                         # (L, L)
    w1p = jnp.kron(eye, w1)                         # (L, L)
    bp = jnp.tile(bias, P).reshape(1, L)

    Tt = _choose_time_tile(T, shift, L, itemsize)
    Rt = Tt * shift
    grid = (B, T // Tt)
    # TODO(synk): if T is prime and N/P is not a multiple of 8, the whole-slab
    # fallback tile may be large; a BoundedSlice row tiling would cover that.

    out = pl.pallas_call(
        _tcn_kernel,
        out_shape=jax.ShapeDtypeStruct((B, Rb, L), dtype),
        grid_spec=pltpu.PrefetchScalarGridSpec(
            num_scalar_prefetch=0,
            grid=grid,
            in_specs=[
                pl.BlockSpec((1, Rt, L), lambda b, t: (b, t, 0)),   # x tile
                pl.BlockSpec((L, L), lambda b, t: (0, 0)),          # w0 (resident)
                pl.BlockSpec((L, L), lambda b, t: (0, 0)),          # w1 (resident)
                pl.BlockSpec((1, L), lambda b, t: (0, 0)),          # bias
            ],
            out_specs=pl.BlockSpec((1, Rt, L), lambda b, t: (b, t, 0)),
            scratch_shapes=[
                pltpu.VMEM((Rt, L), dtype),        # shifted rows
                pltpu.VMEM((shift, L), dtype),     # cross-tile carry
            ],
        ),
        compiler_params=pltpu.CompilerParams(
            dimension_semantics=("parallel", "arbitrary")),
    )(xp, w0p, w1p, bp)

    return out.reshape(B, T, N, C)


def _reference(x, weight, bias):
    # Pure-JAX reference of the same causal conv + ReLU.
    B, T, N, C = x.shape
    x_prev = jnp.concatenate([jnp.zeros((B, 1, N, C), x.dtype), x[:, :-1]], axis=1)
    w0 = weight[:, :, 0, 0]  # (cout, cin)
    w1 = weight[:, :, 0, 1]
    y = (jnp.einsum("btnc,oc->btno", x_prev, w0)
         + jnp.einsum("btnc,oc->btno", x, w1)
         + bias)
    return jnp.maximum(y, 0.0)


if __name__ == "__main__":
    key = jax.random.PRNGKey(0)
    B, T, N, C = 2, 8, 16, 32   # hidden_size = 32
    kernel_size = 2

    k_x, k_w, k_b = jax.random.split(key, 3)
    x = jax.random.normal(k_x, (B, T, N, C), dtype=jnp.float32)

    # Deterministic Conv2d-style init: uniform(-1/sqrt(fan_in), 1/sqrt(fan_in))
    fan_in = C * 1 * kernel_size
    bound = 1.0 / (fan_in ** 0.5)
    weight = jax.random.uniform(k_w, (C, C, 1, kernel_size),
                                minval=-bound, maxval=bound, dtype=jnp.float32)
    bias = jax.random.uniform(k_b, (C,), minval=-bound, maxval=bound,
                              dtype=jnp.float32)

    run = jax.jit(temporal_conv_net)
    y = run(x, weight, bias)
    y = jax.block_until_ready(y)

    y_ref = _reference(x, weight, bias)
    assert y.shape == (B, T, N, C)
    assert jnp.allclose(y, y_ref, atol=1e-5, rtol=1e-5), "mismatch vs reference"

    print("KERNEL_OK")
</pallas_src>

<mosaic_0001>
module attributes {stable_mosaic.version = 11 : i64} {
  func.func @_tcn_kernel(%arg0: i32, %arg1: i32, %arg2: memref<1x32x128xf32, #tpu.memory_space<vmem>>, %arg3: memref<128x128xf32, #tpu.memory_space<vmem>>, %arg4: memref<128x128xf32, #tpu.memory_space<vmem>>, %arg5: memref<1x128xf32, #tpu.memory_space<vmem>>, %arg6: memref<1x32x128xf32, #tpu.memory_space<vmem>>, %arg7: memref<32x128xf32, #tpu.memory_space<vmem>>, %arg8: memref<4x128xf32, #tpu.memory_space<vmem>>) attributes {dimension_semantics = [#tpu.dimension_semantics<parallel>, #tpu.dimension_semantics<arbitrary>], iteration_bounds = array<i64: 2, 1>, scalar_prefetch = 0 : i64, scratch_operands = 2 : i64, tpu.core_type = #tpu.core_type<tc>, window_params = [{transform_indices = @transform_0, window_bounds = array<i64: 1, 32, 128>}, {pipeline_mode = #tpu.pipeline_mode<synchronous>, transform_indices = @transform_1, window_bounds = array<i64: 128, 128>}, {pipeline_mode = #tpu.pipeline_mode<synchronous>, transform_indices = @transform_2, window_bounds = array<i64: 128, 128>}, {pipeline_mode = #tpu.pipeline_mode<synchronous>, transform_indices = @transform_3, window_bounds = array<i64: 1, 128>}, {transform_indices = @transform_4, window_bounds = array<i64: 1, 32, 128>}]} {
    %c0 = arith.constant 0 : index
    %c0_0 = arith.constant 0 : index
    %c0_1 = arith.constant 0 : index
    %0 = vector.load %arg2[%c0, %c0_0, %c0_1] : memref<1x32x128xf32, #tpu.memory_space<vmem>>, vector<1x32x128xf32>
    %1 = vector.shape_cast %0 : vector<1x32x128xf32> to vector<32x128xf32>
    %c0_i32 = arith.constant 0 : i32
    %2 = arith.cmpi eq, %arg1, %c0_i32 : i32
    %3 = arith.extui %2 : i1 to i32
    %c0_i32_2 = arith.constant 0 : i32
    %4 = arith.cmpi ne, %3, %c0_i32_2 : i32
    scf.if %4 {
      %cst_23 = arith.constant 0.000000e+00 : f32
      %25 = vector.broadcast %cst_23 : f32 to vector<4x128xf32>
      %c0_24 = arith.constant 0 : index
      %c0_25 = arith.constant 0 : index
      %26 = vector.load %arg8[%c0_24, %c0_25] : memref<4x128xf32, #tpu.memory_space<vmem>>, vector<4x128xf32>
      tpu.vector_store %arg8[%c0_24, %c0_25], %25 {strides = array<i32>} : memref<4x128xf32, #tpu.memory_space<vmem>>, vector<4x128xf32>,
    } else {
    }
    %c0_3 = arith.constant 0 : index
    %c0_4 = arith.constant 0 : index
    %5 = vector.load %arg8[%c0_3, %c0_4] : memref<4x128xf32, #tpu.memory_space<vmem>>, vector<4x128xf32>
    %c0_5 = arith.constant 0 : index
    %c0_6 = arith.constant 0 : index
    %6 = vector.load %arg7[%c0_5, %c0_6] : memref<32x128xf32, #tpu.memory_space<vmem>>, vector<4x128xf32>
    tpu.vector_store %arg7[%c0_5, %c0_6], %5 {strides = array<i32>} : memref<32x128xf32, #tpu.memory_space<vmem>>, vector<4x128xf32>,
    %7 = vector.extract_strided_slice %1 {offsets = [0, 0], sizes = [28, 128], strides = [1, 1]} : vector<32x128xf32> to vector<28x128xf32>
    %c4 = arith.constant 4 : index
    %c0_7 = arith.constant 0 : index
    %8 = vector.load %arg7[%c4, %c0_7] : memref<32x128xf32, #tpu.memory_space<vmem>>, vector<28x128xf32>
    tpu.vector_store %arg7[%c4, %c0_7], %7 {strides = array<i32>} : memref<32x128xf32, #tpu.memory_space<vmem>>, vector<28x128xf32>,
    %9 = vector.extract_strided_slice %1 {offsets = [28, 0], sizes = [4, 128], strides = [1, 1]} : vector<32x128xf32> to vector<4x128xf32>
    %c0_8 = arith.constant 0 : index
    %c0_9 = arith.constant 0 : index
    %10 = vector.load %arg8[%c0_8, %c0_9] : memref<4x128xf32, #tpu.memory_space<vmem>>, vector<4x128xf32>
    tpu.vector_store %arg8[%c0_8, %c0_9], %9 {strides = array<i32>} : memref<4x128xf32, #tpu.memory_space<vmem>>, vector<4x128xf32>,
    %c0_10 = arith.constant 0 : index
    %c0_11 = arith.constant 0 : index
    %11 = vector.load %arg4[%c0_10, %c0_11] : memref<128x128xf32, #tpu.memory_space<vmem>>, vector<128x128xf32>
    %cst = arith.constant dense<0.000000e+00> : vector<32x128xf32>
    %12 = tpu.matmul %1, %11, %cst {dimension_numbers = #tpu.dot_dimension_numbers<[1], [0], [0], [1], [0, 0, 1, 1], [], []>} : vector<32x128xf32>, vector<128x128xf32>, vector<32x128xf32> -> vector<32x128xf32>
    %c0_12 = arith.constant 0 : index
    %c0_13 = arith.constant 0 : index
    %13 = vector.load %arg7[%c0_12, %c0_13] : memref<32x128xf32, #tpu.memory_space<vmem>>, vector<32x128xf32>
    %c0_14 = arith.constant 0 : index
    %c0_15 = arith.constant 0 : index
    %14 = vector.load %arg3[%c0_14, %c0_15] : memref<128x128xf32, #tpu.memory_space<vmem>>, vector<128x128xf32>
    %cst_16 = arith.constant dense<0.000000e+00> : vector<32x128xf32>
    %15 = tpu.matmul %13, %14, %cst_16 {dimension_numbers = #tpu.dot_dimension_numbers<[1], [0], [0], [1], [0, 0, 1, 1], [], []>} : vector<32x128xf32>, vector<128x128xf32>, vector<32x128xf32> -> vector<32x128xf32>
    %16 = arith.addf %12, %15 : vector<32x128xf32>
    %c0_17 = arith.constant 0 : index
    %c0_18 = arith.constant 0 : index
    %17 = vector.load %arg5[%c0_17, %c0_18] : memref<1x128xf32, #tpu.memory_space<vmem>>, vector<1x128xf32>
    %18 = vector.broadcast %17 : vector<1x128xf32> to vector<32x128xf32>
    %19 = arith.addf %16, %18 : vector<32x128xf32>
    %cst_19 = arith.constant 0.000000e+00 : f32
    %20 = vector.broadcast %cst_19 : f32 to vector<32x128xf32>
    %21 = arith.maximumf %19, %20 : vector<32x128xf32>
    %c0_20 = arith.constant 0 : index
    %c0_21 = arith.constant 0 : index
    %c0_22 = arith.constant 0 : index
    %22 = vector.load %arg6[%c0_20, %c0_21, %c0_22] : memref<1x32x128xf32, #tpu.memory_space<vmem>>, vector<1x32x128xf32>
    %23 = vector.shape_cast %22 : vector<1x32x128xf32> to vector<32x128xf32>
    %24 = vector.shape_cast %21 : vector<32x128xf32> to vector<1x32x128xf32>
    tpu.vector_store %arg6[%c0_20, %c0_21, %c0_22], %24 {strides = array<i32>} : memref<1x32x128xf32, #tpu.memory_space<vmem>>, vector<1x32x128xf32>,
    return
  }
  func.func @transform_0(%arg0: i32, %arg1: i32) -> (i32, i32, i32) {
    %c0_i32 = arith.constant 0 : i32
    %c0_i32_0 = arith.constant 0 : i32
    return %arg0, %arg1, %c0_i32 : i32, i32, i32
  }
  func.func @transform_1(%arg0: i32, %arg1: i32) -> (i32, i32) {
    %c0_i32 = arith.constant 0 : i32
    %c0_i32_0 = arith.constant 0 : i32
    %c0_i32_1 = arith.constant 0 : i32
    return %c0_i32, %c0_i32_0 : i32, i32
  }
  func.func @transform_2(%arg0: i32, %arg1: i32) -> (i32, i32) {
    %c0_i32 = arith.constant 0 : i32
    %c0_i32_0 = arith.constant 0 : i32
    %c0_i32_1 = arith.constant 0 : i32
    return %c0_i32, %c0_i32_0 : i32, i32
  }
  func.func @transform_3(%arg0: i32, %arg1: i32) -> (i32, i32) {
    %c0_i32 = arith.constant 0 : i32
    %c0_i32_0 = arith.constant 0 : i32
    %c0_i32_1 = arith.constant 0 : i32
    return %c0_i32, %c0_i32_0 : i32, i32
  }
  func.func @transform_4(%arg0: i32, %arg1: i32) -> (i32, i32, i32) {
    %c0_i32 = arith.constant 0 : i32
    %c0_i32_0 = arith.constant 0 : i32
    return %arg0, %arg1, %c0_i32 : i32, i32, i32
  }
}

</mosaic_0001>

<llo_original>
// kernel: tile.8
$region0: #{tile.8}
  #allocation0 [shape = 's32[1]{0}', space=sflag, size = 0x4, scoped, tag = 'scoped memory for tile.8']
  %s0 = inlined_call_operand.vmem [shape: f32[32], index: 0, kind: input, shape index: {}]
  %s1 = inlined_call_operand.vmem [shape: f32[4,32], index: 1, kind: output, shape index: {}]
  // Predicated region
  $region2: #{tile.8} parent=0 // pred_check
    _
  $region3: #{tile.8} parent=0 // pred_check_branch
    %3 = sbr.rel (0) target = $region5
  $region4: #{tile.8} parent=0 // pred_region
    _
  $region5: #{tile.8} parent=0 // pred_fallthru
    _
  %v4 = vld [vmem:[%s0] ss:$0 sm:$0xff]
  %5 = vst [vmem:[%s1] sm:$0xf] %v4

// kernel: tile.9
$region0: #{tile.9}
  %s0 = inlined_call_operand.vmem [shape: f32[4,32], index: 0, kind: input, shape index: {}]
  %s1 = inlined_call_operand.vmem [shape: f32[1,128], index: 1, kind: output, shape index: {}]
  $region1: #{tile.9} parent=0
    #allocation0 [shape = 'u8[4096]{0}', space=vmem, size = 0x1000, scoped, tag = 'scoped mem for output reshape']
    #allocation1 [shape = 'u8[4096]{0}', space=vmem, size = 0x1000, scoped, tag = 'scoped mem for input reshape']
    %s3 = sshllo.u32 0, 4
    %v4 = vld [vmem:[%s0] sm:%s3]
    %5 = vst [vmem:[#allocation1] sm:%s3] %v4
    %v6 = vld [vmem:[#allocation1] sm:$0x1]
    %vm7 = vcmask 261120
    %8 = vst.msk [vmem:[#allocation0] sm:$0x1] %vm7, %v6
    %s9 = scalar_lea.vmem [#allocation1], 3
    %v10 = vld [vmem:[%s9] sm:$0x1]
    %11 = vrot.lane.b32.xlu0 %v10, 96
    %v12 = vpop.permute.xlu0 %11
    %vm13 = vcmask 1048320
    %14 = vst.msk [vmem:[#allocation0] sm:$0x1] %vm13, %v12
    %s15 = scalar_lea.vmem [#allocation1], 2
    %v16 = vld [vmem:[%s15] sm:$0x1]
    %17 = vrot.lane.b32.xlu0 %v16, 64
    %v18 = vpop.permute.xlu0 %17
    %vm19 = vcmask 785920
    %20 = vst.msk [vmem:[#allocation0] sm:$0x1] %vm19, %v18
    %s21 = scalar_lea.vmem [#allocation1], 1
    %v22 = vld [vmem:[%s21] sm:$0x1]
    %23 = vrot.lane.b32.xlu0 %v22, 32
    %v24 = vpop.permute.xlu0 %23
    %vm25 = vcmask 523520
    %26 = vst.msk [vmem:[#allocation0] sm:$0x1] %vm25, %v24
    %s28 = sshllo.u32 0, 1
    %v30 = vld [vmem:[#allocation0] sm:%s28]
    %s31 = sshllo.u32 0, 1
    %32 = vst [vmem:[%s1] sm:%s31] %v30

// kernel: temporal_conv_net.1
$region0: #{temporal_conv_net.1}
  #allocation0 [shape = 'u32[]', space=smem, size = 0x4, offset = 0x4, fixed_abs, tag = 'smem constant byte address 0x4 - core index']
  #allocation1 [shape = 'u32[144,128]{1,0:T(1,128)}', space=vmem, size = 0x12000, scoped, tag = 'internal scratch']
  #allocation2 [shape = 'f32[32,128]{1,0:T(8,128)}', space=vmem, size = 0x4000, scoped, tag = 'scratch operand']
  #allocation3 [shape = 'f32[4,128]{1,0:T(4,128)}', space=vmem, size = 0x800, scoped, tag = 'scratch operand']
  %s0 = inlined_call_operand.vmem [shape: f32[2,32,128], index: 0, kind: input, shape index: {}]
  %s1 = inlined_call_operand.vmem [shape: f32[128,128], index: 1, kind: input, shape index: {}]
  %s2 = inlined_call_operand.vmem [shape: f32[128,128], index: 2, kind: input, shape index: {}]
  %s3 = inlined_call_operand.vmem [shape: f32[1,128], index: 3, kind: input, shape index: {}]
  %s4 = inlined_call_operand.vmem [shape: f32[2,32,128], index: 4, kind: output, shape index: {}]
  %s5 = sld [smem:[#allocation0]]
  $region53: #{temporal_conv_net.1} parent=0
    _
  %s7 = ssub.s32 1, %s5
  %s8 = scalar_select 0, %s7, %s5
  loop: start=0, step=1, limit=4
  $region2: #{temporal_conv_net.1} parent=0 // loop_pre_header
    _
  $region3: #{temporal_conv_net.1} parent=0 // loop_header
    %s10 = sphi 0, %s14
    %p11 = scmp.ge.s32.totalorder %s10, 4
    %s17 = sphi 0, %s29
    %s18 = sphi 0, %s25
    %s19 = sphi 0, %s17
    %s20 = sphi 0, %s18
    %s21 = sphi 0, %s19
    %s22 = sphi 0, %s20
    %s34 = sphi 0, %s36
    %s37 = sphi 0, %s34
    %s38 = sphi 0, %s37
    %s54 = sphi 0, %s38
    %s58 = sphi 0, %s58
    %s60 = sphi 0, %s58
    %s61 = sphi 0, %s60
    %s75 = sphi 0, %s61
    %s79 = sphi 0, %s79
    %s81 = sphi 0, %s79
    %s82 = sphi 0, %s81
    %s96 = sphi 0, %s82
    %s100 = sphi 0, %s100
    %s102 = sphi 0, %s100
    %s103 = sphi 0, %s102
    %s117 = sphi 0, %s103
    %s125 = sphi 0, %s127
    %s128 = sphi 0, %s125
    %s129 = sphi 0, %s128
    %s145 = sphi 0, %s129
  $region4: #{temporal_conv_net.1} parent=0 // loop_header_branch
    %13 = sbr.rel (%p11) target = $region8
  $region5: #{temporal_conv_net.1} parent=0 // loop_body
    %s15 = ssub.s32 %s10, 1
    %s16 = ssub.s32 %s10, 2
    %s23 = sadd.s32 1, %s18
    %p24 = scmp.ge.s32.totalorder %s23, 1
    %s25 = scalar_select %p24, 0, %s23
    %s26 = sadd.s32 1, %s17
    %s27 = scalar_select %p24, %s26, %s17
    %p28 = scmp.ge.s32.totalorder %s27, 2
    %s29 = scalar_select %p28, 0, %s27
    %s30 = ssub.s32 %s17, %s29
    %s31 = ssub.s32 %s18, %s25
    %s32 = sor.u32 %s30, %s31
    %p33 = scmp.eq.s32.totalorder %s32, 0
    %s35 = sadd.s32 %s34, 1
    %s36 = scalar_select %p33, %s34, %s35
    %p39 = pneg %p33
    %p40 = scmp.eq.s32.totalorder %s10, 1
    %p41 = por %p39, %p40
    %p42 = scmp.ne.s32.totalorder %s34, %s37
    %p43 = scmp.eq.s32.totalorder %s10, 0
    %p44 = por %p42, %p43
    %p45 = scmp.ne.s32.totalorder %s34, %s37
    %p46 = scmp.eq.s32.totalorder %s15, 1
    %p47 = por %p45, %p46
    %p48 = scmp.ne.s32.totalorder %s37, %s38
    %p49 = scmp.eq.s32.totalorder %s15, 0
    %p50 = por %p48, %p49
    %p51 = scmp.ne.s32.totalorder %s37, %s38
    %p52 = scmp.eq.s32.totalorder %s16, 1
    %p53 = por %p51, %p52
    %p55 = scmp.ne.s32.totalorder %s38, %s54
    %p56 = scmp.eq.s32.totalorder %s16, 0
    %p57 = por %p55, %p56
    %s59 = sadd.s32 %s58, 1
    %p62 = scmp.eq.s32.totalorder %s10, 1
    %p63 = scmp.ne.s32.totalorder %s58, %s60
    %p64 = scmp.eq.s32.totalorder %s10, 0
    %p65 = por %p63, %p64
    %p66 = scmp.ne.s32.totalorder %s58, %s60
    %p67 = scmp.eq.s32.totalorder %s15, 1
    %p68 = por %p66, %p67
    %p69 = scmp.ne.s32.totalorder %s60, %s61
    %p70 = scmp.eq.s32.totalorder %s15, 0
    %p71 = por %p69, %p70
    %p72 = scmp.ne.s32.totalorder %s60, %s61
    %p73 = scmp.eq.s32.totalorder %s16, 1
    %p74 = por %p72, %p73
    %p76 = scmp.ne.s32.totalorder %s61, %s75
    %p77 = scmp.eq.s32.totalorder %s16, 0
    %p78 = por %p76, %p77
    %s80 = sadd.s32 %s79, 1
    %p83 = scmp.eq.s32.totalorder %s10, 1
    %p84 = scmp.ne.s32.totalorder %s79, %s81
    %p85 = scmp.eq.s32.totalorder %s10, 0
    %p86 = por %p84, %p85
    %p87 = scmp.ne.s32.totalorder %s79, %s81
    %p88 = scmp.eq.s32.totalorder %s15, 1
    %p89 = por %p87, %p88
    %p90 = scmp.ne.s32.totalorder %s81, %s82
    %p91 = scmp.eq.s32.totalorder %s15, 0
    %p92 = por %p90, %p91
    %p93 = scmp.ne.s32.totalorder %s81, %s82
    %p94 = scmp.eq.s32.totalorder %s16, 1
    %p95 = por %p93, %p94
    %p97 = scmp.ne.s32.totalorder %s82, %s96
    %p98 = scmp.eq.s32.totalorder %s16, 0
    %p99 = por %p97, %p98
    %s101 = sadd.s32 %s100, 1
    %p104 = scmp.eq.s32.totalorder %s10, 1
    %p105 = scmp.ne.s32.totalorder %s100, %s102
    %p106 = scmp.eq.s32.totalorder %s10, 0
    %p107 = por %p105, %p106
    %p108 = scmp.ne.s32.totalorder %s100, %s102
    %p109 = scmp.eq.s32.totalorder %s15, 1
    %p110 = por %p108, %p109
    %p111 = scmp.ne.s32.totalorder %s102, %s103
    %p112 = scmp.eq.s32.totalorder %s15, 0
    %p113 = por %p111, %p112
    %p114 = scmp.ne.s32.totalorder %s102, %s103
    %p115 = scmp.eq.s32.totalorder %s16, 1
    %p116 = por %p114, %p115
    %p118 = scmp.ne.s32.totalorder %s103, %s117
    %p119 = scmp.eq.s32.totalorder %s16, 0
    %p120 = por %p118, %p119
    %s121 = ssub.s32 %s17, %s29
    %s122 = ssub.s32 %s18, %s25
    %s123 = sor.u32 %s121, %s122
    %p124 = scmp.eq.s32.totalorder %s123, 0
    %s126 = sadd.s32 %s125, 1
    %s127 = scalar_select %p124, %s125, %s126
    %p130 = pneg %p124
    %p131 = scmp.eq.s32.totalorder %s10, 1
    %p132 = por %p130, %p131
    %p133 = scmp.ne.s32.totalorder %s125, %s128
    %p134 = scmp.eq.s32.totalorder %s10, 0
    %p135 = por %p133, %p134
    %p136 = scmp.ne.s32.totalorder %s125, %s128
    %p137 = scmp.eq.s32.totalorder %s15, 1
    %p138 = por %p136, %p137
    %p139 = scmp.ne.s32.totalorder %s128, %s129
    %p140 = scmp.eq.s32.totalorder %s15, 0
    %p141 = por %p139, %p140
    %p142 = scmp.ne.s32.totalorder %s128, %s129
    %p143 = scmp.eq.s32.totalorder %s16, 1
    %p144 = por %p142, %p143
    %p146 = scmp.ne.s32.totalorder %s129, %s145
    %p147 = scmp.eq.s32.totalorder %s16, 0
    %p148 = por %p146, %p147
    %p149 = scmp.le.s32.totalorder 1, %s10
    %p150 = scmp.lt.s32.totalorder %s10, 3
    %p151 = pnand %p149, %p150
    %p152 = pneg %p151
    // Predicated region
    $region9: #{temporal_conv_net.1} parent=5 // pred_check
      _
    $region10: #{temporal_conv_net.1} parent=5 // pred_check_branch
      %154 = sbr.rel (%p151) target = $region12
    $region11: #{temporal_conv_net.1} parent=5 // pred_region
      %s155 = ssub.s32 %s10, 1
      // Predicated region
      $region13: #{temporal_conv_net.1} parent=11 // pred_check
        %p156 = pneg %p71
      $region14: #{temporal_conv_net.1} parent=11 // pred_check_branch
        %158 = sbr.rel (%p156) target = $region16
      $region15: #{temporal_conv_net.1} parent=11 // pred_region
        _
      $region16: #{temporal_conv_net.1} parent=11 // pred_fallthru
        _
      // Predicated region
      $region17: #{temporal_conv_net.1} parent=11 // pred_check
        %p159 = pneg %p92
      $region18: #{temporal_conv_net.1} parent=11 // pred_check_branch
        %161 = sbr.rel (%p159) target = $region20
      $region19: #{temporal_conv_net.1} parent=11 // pred_region
        _
      $region20: #{temporal_conv_net.1} parent=11 // pred_fallthru
        _
      // Predicated region
      $region21: #{temporal_conv_net.1} parent=11 // pred_check
        %p162 = pneg %p113
      $region22: #{temporal_conv_net.1} parent=11 // pred_check_branch
        %164 = sbr.rel (%p162) target = $region24
      $region23: #{temporal_conv_net.1} parent=11 // pred_region
        _
      $region24: #{temporal_conv_net.1} parent=11 // pred_fallthru
        _
    $region12: #{temporal_conv_net.1} parent=5 // pred_fallthru
      _
    %p165 = scmp.lt.s32.totalorder %s10, 2
    // Predicated region
    $region25: #{temporal_conv_net.1} parent=5 // pred_check
      %p166 = pneg %p165
    $region26: #{temporal_conv_net.1} parent=5 // pred_check_branch
      %168 = sbr.rel (%p166) target = $region28
    $region27: #{temporal_conv_net.1} parent=5 // pred_region
      // Predicated region
      $region29: #{temporal_conv_net.1} parent=27 // pred_check
        %p169 = pneg %p44
      $region30: #{temporal_conv_net.1} parent=27 // pred_check_branch
        %171 = sbr.rel (%p169) target = $region32
      $region31: #{temporal_conv_net.1} parent=27 // pred_region
        %s172 = smul.u32 4, %s18
        %p173 = scmp.lt.s32.totalorder %s17, 1
        %s174 = scalar_select %p173, %s17, 1
        %p175 = scmp.lt.s32.totalorder %s172, 3
        %s176 = scalar_select %p175, %s172, 3
        %s177 = smul.addr %s174, 4
        %s178 = sadd.s32 %s176, %s177
        %s179 = smul.addr %s178, 8
        %s180 = scalar_lea.vmem %s0, %s179
        %s181 = smul.u32 4, %s18
      $region32: #{temporal_conv_net.1} parent=27 // pred_fallthru
        _
    $region28: #{temporal_conv_net.1} parent=5 // pred_fallthru
      _
    %p182 = scmp.le.s32.totalorder 1, %s10
    %p183 = scmp.lt.s32.totalorder %s10, 3
    %p184 = pnand %p182, %p183
    %p185 = pneg %p184
    // Predicated region
    $region33: #{temporal_conv_net.1} parent=5 // pred_check
      _
    $region34: #{temporal_conv_net.1} parent=5 // pred_check_branch
      %187 = sbr.rel (%p184) target = $region36
    $region35: #{temporal_conv_net.1} parent=5 // pred_region
      %s188 = ssub.s32 %s10, 1
      %s189 = smul.u32 4, %s20
      %p190 = scmp.lt.s32.totalorder %s19, 1
      %s191 = scalar_select %p190, %s19, 1
      %p192 = scmp.lt.s32.totalorder %s189, 3
      %s193 = scalar_select %p192, %s189, 3
      %s194 = smul.addr %s191, 4
      %s195 = sadd.s32 %s193, %s194
      %s196 = smul.addr %s195, 8
      %s197 = scalar_lea.vmem %s0, %s196
      %p198 = pneg %p50
      %p199 = pneg %p47
      %p200 = pneg %p71
      %p201 = pneg %p68
      %p202 = pneg %p92
      %p203 = pneg %p89
      %p204 = pneg %p113
      %p205 = pneg %p110
      %p206 = pneg %p141
      %p207 = pneg %p138
      %s208 = smul.u32 4, %s20
      %p209 = scmp.lt.s32.totalorder %s19, 1
      %s210 = scalar_select %p209, %s19, 1
      %p211 = scmp.lt.s32.totalorder %s208, 3
      %s212 = scalar_select %p211, %s208, 3
      %s213 = smul.addr %s210, 4
      %s214 = sadd.s32 %s212, %s213
      %s215 = smul.addr %s214, 8
      %s216 = scalar_lea.vmem %s4, %s215
      %s217 = smul.u32 4, %s20
      %p218 = scmp.lt.s32.totalorder %s19, 1
      %s219 = scalar_select %p218, %s19, 1
      %p220 = scmp.lt.s32.totalorder %s217, 3
      %s221 = scalar_select %p220, %s217, 3
      %s222 = smul.addr %s219, 4
      %s223 = sadd.s32 %s221, %s222
      %s224 = smul.addr %s223, 8
      %s225 = scalar_lea.vmem %s0, %s224
      %s226 = smul.u32 4, %s20
      %s227 = smul.u32 4, %s20
      %p228 = scmp.lt.s32.totalorder %s19, 1
      %s229 = scalar_select %p228, %s19, 1
      %p230 = scmp.lt.s32.totalorder %s227, 3
      %s231 = scalar_select %p230, %s227, 3
      %s232 = smul.addr %s229, 4
      %s233 = sadd.s32 %s231, %s232
      %s234 = smul.addr %s233, 8
      %s235 = scalar_lea.vmem %s4, %s234
      %s236 = smul.u32 4, %s20
      %v237 = vld [vmem:[%s225] sm:$0xff]
      %v238 = vld [vmem:[%s225 + $0x8] sm:$0xff]
      %v239 = vld [vmem:[%s225 + $0x10] sm:$0xff]
      %v240 = vld [vmem:[%s225 + $0x18] sm:$0xff]
      %p241 = scmp.eq.s32.totalorder %s20, 0
      // Predicated region
      $region37: #{temporal_conv_net.1} parent=35 // pred_check
        %p242 = pneg %p241
      $region38: #{temporal_conv_net.1} parent=35 // pred_check_branch
        %244 = sbr.rel (%p242) target = $region40
      $region39: #{temporal_conv_net.1} parent=35 // pred_region
        %245 = vst [vmem:[#allocation3] sm:$0xf] 0.0
      $region40: #{temporal_conv_net.1} parent=35 // pred_fallthru
        _
      %v246 = vld [vmem:[#allocation3] sm:$0xf]
      %247 = vst [vmem:[#allocation2] sm:$0xf] %v246
      %248 = vst [vmem:[#allocation2 + $0x4] sm:$0xff] %v237
      %249 = vst [vmem:[#allocation2 + $0xc] sm:$0xff] %v238
      %250 = vst [vmem:[#allocation2 + $0x14] sm:$0xff] %v239
      %251 = vst [vmem:[#allocation2 + $0x1c] sm:$0xf] %v240
      %252 = vst [vmem:[#allocation3 - $0x4] sm:$0xf0] %v240
      %v253 = vld [vmem:[%s2] sm:$0xff]
      %v254 = vld [vmem:[%s2 + $0x8] sm:$0xff]
      %v255 = vld [vmem:[%s2 + $0x10] sm:$0xff]
      %v256 = vld [vmem:[%s2 + $0x18] sm:$0xff]
      %v257 = vld [vmem:[%s2 + $0x20] sm:$0xff]
      %v258 = vld [vmem:[%s2 + $0x28] sm:$0xff]
      %v259 = vld [vmem:[%s2 + $0x30] sm:$0xff]
      %v260 = vld [vmem:[%s2 + $0x38] sm:$0xff]
      %v261 = vld [vmem:[%s2 + $0x40] sm:$0xff]
      %v262 = vld [vmem:[%s2 + $0x48] sm:$0xff]
      %v263 = vld [vmem:[%s2 + $0x50] sm:$0xff]
      %v264 = vld [vmem:[%s2 + $0x58] sm:$0xff]
      %v265 = vld [vmem:[%s2 + $0x60] sm:$0xff]
      %v266 = vld [vmem:[%s2 + $0x68] sm:$0xff]
      %v267 = vld [vmem:[%s2 + $0x70] sm:$0xff]
      %v268 = vld [vmem:[%s2 + $0x78] sm:$0xff]
      %v269 = vld [vmem:[#allocation2] sm:$0xff]
      %v270 = vld [vmem:[#allocation2 + $0x8] sm:$0xff]
      %v271 = vld [vmem:[#allocation2 + $0x10] sm:$0xff]
      %v272 = vld [vmem:[#allocation2 + $0x18] sm:$0xff]
      %v273 = vld [vmem:[%s1] sm:$0xff]
      %v274 = vld [vmem:[%s1 + $0x8] sm:$0xff]
      %v275 = vld [vmem:[%s1 + $0x10] sm:$0xff]
      %v276 = vld [vmem:[%s1 + $0x18] sm:$0xff]
      %v277 = vld [vmem:[%s1 + $0x20] sm:$0xff]
      %v278 = vld [vmem:[%s1 + $0x28] sm:$0xff]
      %v279 = vld [vmem:[%s1 + $0x30] sm:$0xff]
      %v280 = vld [vmem:[%s1 + $0x38] sm:$0xff]
      %v281 = vld [vmem:[%s1 + $0x40] sm:$0xff]
      %v282 = vld [vmem:[%s1 + $0x48] sm:$0xff]
      %v283 = vld [vmem:[%s1 + $0x50] sm:$0xff]
      %v284 = vld [vmem:[%s1 + $0x58] sm:$0xff]
      %v285 = vld [vmem:[%s1 + $0x60] sm:$0xff]
      %v286 = vld [vmem:[%s1 + $0x68] sm:$0xff]
      %v287 = vld [vmem:[%s1 + $0x70] sm:$0xff]
      %v288 = vld [vmem:[%s1 + $0x78] sm:$0xff]
      %289 = vmatprep.subr.mxu0 0.0
      %290 = vmatpush1.msra.mxu0 %v273
      %291 = vmatprep.subr.mxu0 0.0
      %292 = vmatpush1.msra.mxu0 %v274
      %293 = vmatprep.subr.mxu0 0.0
      %294 = vmatpush1.msra.mxu0 %v275
      %295 = vmatprep.subr.mxu0 0.0
      %296 = vmatpush1.msra.mxu0 %v276
      %297 = vmatprep.subr.mxu0 0.0
      %298 = vmatpush1.msra.mxu0 %v277
      %299 = vmatprep.subr.mxu0 0.0
      %300 = vmatpush1.msra.mxu0 %v278
      %301 = vmatprep.subr.mxu0 0.0
      %302 = vmatpush1.msra.mxu0 %v279
      %303 = vmatprep.subr.mxu0 0.0
      %304 = vmatpush1.msra.mxu0 %v280
      %305 = vmatprep.subr.mxu0 0.0
      %306 = vmatpush1.msra.mxu0 %v281
      %307 = vmatprep.subr.mxu0 0.0
      %308 = vmatpush1.msra.mxu0 %v282
      %309 = vmatprep.subr.mxu0 0.0
      %310 = vmatpush1.msra.mxu0 %v283
      %311 = vmatprep.subr.mxu0 0.0
      %312 = vmatpush1.msra.mxu0 %v284
      %313 = vmatprep.subr.mxu0 0.0
      %314 = vmatpush1.msra.mxu0 %v285
      %315 = vmatprep.subr.mxu0 0.0
      %316 = vmatpush1.msra.mxu0 %v286
      %317 = vmatprep.subr.mxu0 0.0
      %318 = vmatpush1.msra.mxu0 %v287
      %319 = vmatprep.subr.mxu0 0.0
      %320 = vmatpush1.msra.mxu0 %v288
      %321 = vmatprep.subr.mxu0 0.0
      %322 = vmatpush1.msra.mxu0 0.0
      %323 = vmatprep.subr.mxu0 0.0
      %324 = vmatpush1.msra.mxu0 0.0
      %325 = vmatprep.subr.mxu0 0.0
      %326 = vmatpush1.msra.mxu0 0.0
      %327 = vmatprep.subr.mxu0 0.0
      %328 = vmatpush1.msra.mxu0 0.0
      %329 = vmatprep.subr.mxu0 0.0
      %330 = vmatpush1.msra.mxu0 0.0
      %331 = vmatprep.subr.mxu0 0.0
      %332 = vmatpush1.msra.mxu0 0.0
      %333 = vmatprep.subr.mxu0 0.0
      %334 = vmatpush1.msra.mxu0 0.0
      %335 = vmatprep.subr.mxu0 0.0
      %336 = vmatpush1.msra.mxu0 0.0
      %337 = vmatprep.subr.mxu0 0.0
      %338 = vmatpush1.msra.mxu0 0.0
      %339 = vmatprep.subr.mxu0 0.0
      %340 = vmatpush1.msra.mxu0 0.0
      %341 = vmatprep.subr.mxu0 0.0
      %342 = vmatpush1.msra.mxu0 0.0
      %343 = vmatprep.subr.mxu0 0.0
      %344 = vmatpush1.msra.mxu0 0.0
      %345 = vmatprep.subr.mxu0 0.0
      %346 = vmatpush1.msra.mxu0 0.0
      %347 = vmatprep.subr.mxu0 0.0
      %348 = vmatpush1.msra.mxu0 0.0
      %349 = vmatprep.subr.mxu0 0.0
      %350 = vmatpush1.msra.mxu0 0.0
      %351 = vmatprep.subr.mxu0 0.0
      %352 = vmatpush1.msra.mxu0 0.0
      %353 = vmatprep.mubr.f32.mxu0 0.0
      %354 = vmatmul.mubr.f32.gmra.mrb[0].mxu0 %v269
      %v355 = vpop.f32.mrb[0].mxu0
      %v356 = vadd.f32 0.0, %v355
      %v357 = vpop.f32.mrb[0].mxu0
      %358 = vmatprep.mubr.f32.mxu0 0.0
      %359 = vmatmul.mubr.f32.gmra.mrb[0].mxu0 %v270
      %v360 = vpop.f32.mrb[0].mxu0
      %v361 = vadd.f32 0.0, %v360
      %v362 = vpop.f32.mrb[0].mxu0
      %363 = vmatprep.mubr.f32.mxu0 0.0
      %364 = vmatmul.mubr.f32.gmra.mrb[0].mxu0 %v271
      %v365 = vpop.f32.mrb[0].mxu0
      %v366 = vadd.f32 0.0, %v365
      %v367 = vpop.f32.mrb[0].mxu0
      %368 = vmatprep.mubr.f32.mxu0 0.0
      %369 = vmatmul.mubr.f32.gmra.mrb[0].mxu0 %v272
      %v370 = vpop.f32.mrb[0].mxu0
      %v371 = vadd.f32 0.0, %v370
      %v372 = vpop.f32.mrb[0].mxu0
      %373 = vdwg.mxu0
      %374 = vmatprep.subr.mxu0 0.0
      %375 = vmatpush1.msra.mxu0 %v253
      %376 = vmatprep.subr.mxu0 0.0
      %377 = vmatpush1.msra.mxu0 %v254
      %378 = vmatprep.subr.mxu0 0.0
      %379 = vmatpush1.msra.mxu0 %v255
      %380 = vmatprep.subr.mxu0 0.0
      %381 = vmatpush1.msra.mxu0 %v256
      %382 = vmatprep.subr.mxu0 0.0
      %383 = vmatpush1.msra.mxu0 %v257
      %384 = vmatprep.subr.mxu0 0.0
      %385 = vmatpush1.msra.mxu0 %v258
      %386 = vmatprep.subr.mxu0 0.0
      %387 = vmatpush1.msra.mxu0 %v259
      %388 = vmatprep.subr.mxu0 0.0
      %389 = vmatpush1.msra.mxu0 %v260
      %390 = vmatprep.subr.mxu0 0.0
      %391 = vmatpush1.msra.mxu0 %v261
      %392 = vmatprep.subr.mxu0 0.0
      %393 = vmatpush1.msra.mxu0 %v262
      %394 = vmatprep.subr.mxu0 0.0
      %395 = vmatpush1.msra.mxu0 %v263
      %396 = vmatprep.subr.mxu0 0.0
      %397 = vmatpush1.msra.mxu0 %v264
      %398 = vmatprep.subr.mxu0 0.0
      %399 = vmatpush1.msra.mxu0 %v265
      %400 = vmatprep.subr.mxu0 0.0
      %401 = vmatpush1.msra.mxu0 %v266
      %402 = vmatprep.subr.mxu0 0.0
      %403 = vmatpush1.msra.mxu0 %v267
      %404 = vmatprep.subr.mxu0 0.0
      %405 = vmatpush1.msra.mxu0 %v268
      %406 = vmatprep.subr.mxu0 0.0
      %407 = vmatpush1.msra.mxu0 0.0
      %408 = vmatprep.subr.mxu0 0.0
      %409 = vmatpush1.msra.mxu0 0.0
      %410 = vmatprep.subr.mxu0 0.0
      %411 = vmatpush1.msra.mxu0 0.0
      %412 = vmatprep.subr.mxu0 0.0
      %413 = vmatpush1.msra.mxu0 0.0
      %414 = vmatprep.subr.mxu0 0.0
      %415 = vmatpush1.msra.mxu0 0.0
      %416 = vmatprep.subr.mxu0 0.0
      %417 = vmatpush1.msra.mxu0 0.0
      %418 = vmatprep.subr.mxu0 0.0
      %419 = vmatpush1.msra.mxu0 0.0
      %420 = vmatprep.subr.mxu0 0.0
      %421 = vmatpush1.msra.mxu0 0.0
      %422 = vmatprep.subr.mxu0 0.0
      %423 = vmatpush1.msra.mxu0 0.0
      %424 = vmatprep.subr.mxu0 0.0
      %425 = vmatpush1.msra.mxu0 0.0
      %426 = vmatprep.subr.mxu0 0.0
      %427 = vmatpush1.msra.mxu0 0.0
      %428 = vmatprep.subr.mxu0 0.0
      %429 = vmatpush1.msra.mxu0 0.0
      %430 = vmatprep.subr.mxu0 0.0
      %431 = vmatpush1.msra.mxu0 0.0
      %432 = vmatprep.subr.mxu0 0.0
      %433 = vmatpush1.msra.mxu0 0.0
      %434 = vmatprep.subr.mxu0 0.0
      %435 = vmatpush1.msra.mxu0 0.0
      %436 = vmatprep.subr.mxu0 0.0
      %437 = vmatpush1.msra.mxu0 0.0
      %438 = vmatprep.mubr.f32.mxu0 0.0
      %439 = vmatmul.mubr.f32.gmra.mrb[0].mxu0 %v237
      %v440 = vpop.f32.mrb[0].mxu0
      %v441 = vadd.f32 %v356, %v440
      %v442 = vpop.f32.mrb[0].mxu0
      %443 = vmatprep.mubr.f32.mxu0 0.0
      %444 = vmatmul.mubr.f32.gmra.mrb[0].mxu0 %v238
      %v445 = vpop.f32.mrb[0].mxu0
      %v446 = vadd.f32 %v361, %v445
      %v447 = vpop.f32.mrb[0].mxu0
      %448 = vmatprep.mubr.f32.mxu0 0.0
      %449 = vmatmul.mubr.f32.gmra.mrb[0].mxu0 %v239
      %v450 = vpop.f32.mrb[0].mxu0
      %v451 = vadd.f32 %v366, %v450
      %v452 = vpop.f32.mrb[0].mxu0
      %453 = vmatprep.mubr.f32.mxu0 0.0
      %454 = vmatmul.mubr.f32.gmra.mrb[0].mxu0 %v240
      %v455 = vpop.f32.mrb[0].mxu0
      %v456 = vadd.f32 %v371, %v455
      %v457 = vpop.f32.mrb[0].mxu0
      %458 = vdwg.mxu0
      %v459 = vld [vmem:[%s3] sm:$0x1]
      %v461 = vlaneseq
      %v462 = vshrl.u32 %v461, 7
      %v463 = vsub.s32 0, %v462
      %v464 = vrot.slane %v459, %v463
      %v466 = vadd.f32 %v441, %v464
      %v467 = vadd.f32 %v446, %v464
      %v468 = vadd.f32 %v451, %v464
      %v469 = vadd.f32 %v456, %v464
      %v470 = vmax.f32 %v466, 0.0
      %v471 = vmax.f32 %v467, 0.0
      %v472 = vmax.f32 %v468, 0.0
      %v473 = vmax.f32 %v469, 0.0
      %474 = vst [vmem:[%s235] sm:$0xff] %v470
      %475 = vst [vmem:[%s235 + $0x8] sm:$0xff] %v471
      %476 = vst [vmem:[%s235 + $0x10] sm:$0xff] %v472
      %477 = vst [vmem:[%s235 + $0x18] sm:$0xff] %v473
      %s478 = smul.u32 4, %s20
      %p479 = scmp.lt.s32.totalorder %s19, 1
      %s480 = scalar_select %p479, %s19, 1
      %p481 = scmp.lt.s32.totalorder %s478, 3
      %s482 = scalar_select %p481, %s478, 3
      %s483 = smul.addr %s480, 4
      %s484 = sadd.s32 %s482, %s483
      %s485 = smul.addr %s484, 8
      %s486 = scalar_lea.vmem %s4, %s485
      // Predicated region
      $region41: #{temporal_conv_net.1} parent=35 // pred_check
        %p487 = pneg %p138
      $region42: #{temporal_conv_net.1} parent=35 // pred_check_branch
        %489 = sbr.rel (%p487) target = $region44
      $region43: #{temporal_conv_net.1} parent=35 // pred_region
        %s490 = smul.u32 4, %s20
      $region44: #{temporal_conv_net.1} parent=35 // pred_fallthru
        _
    $region36: #{temporal_conv_net.1} parent=5 // pred_fallthru
      _
    %p491 = scmp.le.s32.totalorder 2, %s10
    // Predicated region
    $region45: #{temporal_conv_net.1} parent=5 // pred_check
      %p492 = pneg %p491
    $region46: #{temporal_conv_net.1} parent=5 // pred_check_branch
      %494 = sbr.rel (%p492) target = $region48
    $region47: #{temporal_conv_net.1} parent=5 // pred_region
      %s495 = ssub.s32 %s10, 2
      // Predicated region
      $region49: #{temporal_conv_net.1} parent=47 // pred_check
        %p496 = pneg %p144
      $region50: #{temporal_conv_net.1} parent=47 // pred_check_branch
        %498 = sbr.rel (%p496) target = $region52
      $region51: #{temporal_conv_net.1} parent=47 // pred_region
        %s499 = smul.u32 4, %s22
        %p500 = scmp.lt.s32.totalorder %s21, 1
        %s501 = scalar_select %p500, %s21, 1
        %p502 = scmp.lt.s32.totalorder %s499, 3
        %s503 = scalar_select %p502, %s499, 3
        %s504 = smul.addr %s501, 4
        %s505 = sadd.s32 %s503, %s504
        %s506 = smul.addr %s505, 8
        %s507 = scalar_lea.vmem %s4, %s506
      $region52: #{temporal_conv_net.1} parent=47 // pred_fallthru
        _
    $region48: #{temporal_conv_net.1} parent=5 // pred_fallthru
      _
  $region6: #{temporal_conv_net.1} parent=0 // loop_footer
    %s14 = sadd.s32 1, %s10
  $region7: #{temporal_conv_net.1} parent=0 // loop_footer_branch
    %9 = sbr.rel target = $region3
  $region8: #{temporal_conv_net.1} parent=0 // loop_exit
    _

</llo_original>
